<compile_context>
chip_gen: v5e
topology: v5e:2x2
jax: 0.10.0
libtpu: 0.0.40
codegen_flags: <defaults>
</compile_context>

<pallas_src>
import functools
import math

import jax
import jax.numpy as jnp
import numpy as np
from jax.experimental import pallas as pl
from jax.experimental.pallas import tpu as pltpu


_RESEED_EVERY = 4          # exp_sine: direct re-evaluation every N octaves
_MAX_BLOCK_ROWS = 8192     # keeps double-buffered blocks well under 32 MiB VMEM


def _pe_kernel(x_ref, o_ref, scr_ref=None, *, depth, exp_sine):
    """Positional-encoding kernel.

    x_ref  : (d, block_rows)           rows of the flattened input in lanes
    o_ref  : (block_rows, 2*depth*d)   if scr_ref is not None  (fused layout)
             (2*depth*d, block_rows)   otherwise               (slab layout)
    scr_ref: (ceil8(2*depth*d), block_rows) f32 scratch, fused path only
    """
    d = x_ref.shape[0]
    fused = scr_ref is not None
    slab = scr_ref if fused else o_ref
    slab_dtype = slab.dtype

    x = x_ref[...].astype(jnp.float32)
    pix = math.pi * x
    # Only two transcendental evaluations per input element (plus occasional
    # reseeds for exp_sine); remaining terms come from cheap VALU recurrences.
    s1 = jnp.sin(pix)
    c1 = jnp.cos(pix)

    s, c = s1, c1
    slab[0:d, :] = s.astype(slab_dtype)
    slab[depth * d:(depth + 1) * d, :] = c.astype(slab_dtype)
    for k in range(1, depth):
        if exp_sine:
            if k % _RESEED_EVERY == 0:
                ang = (2.0 ** k) * pix                      # exact reseed
                s, c = jnp.sin(ang), jnp.cos(ang)
            else:
                s, c = 2.0 * s * c, 1.0 - 2.0 * s * s       # double angle
        else:
            s, c = s * c1 + c * s1, c * c1 - s * s1         # angle addition
        slab[k * d:(k + 1) * d, :] = s.astype(slab_dtype)
        slab[(depth + k) * d:(depth + k + 1) * d, :] = c.astype(slab_dtype)

    if fused:
        # One in-VMEM relayout instead of an extra HBM pass in XLA.
        out_d = o_ref.shape[-1]
        o_ref[...] = jnp.transpose(scr_ref[...])[:, :out_d].astype(o_ref.dtype)


def _pick_block_rows(n_rows, max_block_rows=_MAX_BLOCK_ROWS):
    if n_rows <= 1024:
        return n_rows                                  # single (full-dim) block
    n_steps = max(2, pl.cdiv(n_rows, max_block_rows))  # >=2 steps for megacore
    blk = pl.cdiv(n_rows, n_steps)
    return min(max_block_rows, pl.cdiv(blk, 128) * 128)


def _cost(n_rows, d, depth, itemsize):
    out_d = 2 * depth * d
    return pl.CostEstimate(
        flops=10 * depth * n_rows * d,
        transcendentals=2 * n_rows * d,
        bytes_accessed=(d + out_d) * n_rows * itemsize,
    )


def _call_fused(xt, n_rows, d, depth, exp_sine, block_rows):
    out_d = 2 * depth * d
    scr_rows = pl.cdiv(out_d, 8) * 8
    grid = (pl.cdiv(n_rows, block_rows),)
    return pl.pallas_call(
        functools.partial(_pe_kernel, depth=depth, exp_sine=exp_sine),
        out_shape=jax.ShapeDtypeStruct((n_rows, out_d), xt.dtype),
        grid=grid,
        in_specs=[pl.BlockSpec((d, block_rows), lambda i: (0, i))],
        out_specs=pl.BlockSpec((block_rows, out_d), lambda i: (i, 0)),
        scratch_shapes=[pltpu.VMEM((scr_rows, block_rows), jnp.float32)],
        compiler_params=pltpu.CompilerParams(dimension_semantics=("parallel",)),
        cost_estimate=_cost(n_rows, d, depth, xt.dtype.itemsize),
    )(xt)


def _call_slab(xt, n_rows, d, depth, exp_sine, block_rows):
    out_d = 2 * depth * d
    grid = (pl.cdiv(n_rows, block_rows),)
    return pl.pallas_call(
        functools.partial(_pe_kernel, depth=depth, exp_sine=exp_sine),
        out_shape=jax.ShapeDtypeStruct((out_d, n_rows), xt.dtype),
        grid=grid,
        in_specs=[pl.BlockSpec((d, block_rows), lambda i: (0, i))],
        out_specs=pl.BlockSpec((out_d, block_rows), lambda i: (0, i)),
        compiler_params=pltpu.CompilerParams(dimension_semantics=("parallel",)),
        cost_estimate=_cost(n_rows, d, depth, xt.dtype.itemsize),
    )(xt)


_FUSED_OK = {}   # spec -> whether the fused-layout kernel lowers on this toolchain


def nerf_positional_encoding(x, depth=10, sine_type="lin_sine",
                             max_block_rows=_MAX_BLOCK_ROWS):
    """Pallas implementation of NerfPositionalEncoding.forward.

    x: float array of shape (..., D).  Returns (..., D * depth * 2) ordered
    exactly like torch.cat([sin(b*pi*x) for b in bases] +
                           [cos(b*pi*x) for b in bases], dim=-1).
    """
    if sine_type == "lin_sine":
        exp_sine = False
    elif sine_type == "exp_sine":
        exp_sine = True
    else:
        raise ValueError(f"unknown sine_type: {sine_type}")

    orig_shape = x.shape
    d = orig_shape[-1]
    out_d = d * depth * 2
    n_rows = 1
    for s in orig_shape[:-1]:
        n_rows *= s

    # Rows of the flattened input go to the lane dim so both sin/cos and the
    # recurrences run lane-dense.  This costs one small XLA transpose of the
    # input only (1/(2*depth) of the output bytes).
    xt = jnp.transpose(x.reshape(n_rows, d))          # (d, n_rows)
    block_rows = _pick_block_rows(n_rows, max_block_rows)

    key = (n_rows, d, depth, exp_sine, block_rows, str(x.dtype))
    out2d = None
    if _FUSED_OK.get(key, True):
        try:
            out2d = _call_fused(xt, n_rows, d, depth, exp_sine, block_rows)
            _FUSED_OK[key] = True
        except Exception:
            # TODO(synk): fused in-kernel relayout unavailable; using slab path.
            _FUSED_OK[key] = False
    if out2d is None:
        # Fallback: per-term slab layout + XLA transpose (one extra HBM pass).
        slab = _call_slab(xt, n_rows, d, depth, exp_sine, block_rows)
        out2d = jnp.transpose(slab)

    return out2d.reshape(*orig_shape[:-1], out_d)


def _reference_np(x, depth=10, sine_type="lin_sine"):
    x64 = np.asarray(x, dtype=np.float64)
    if sine_type == "lin_sine":
        bases = [i + 1 for i in range(depth)]
    else:
        bases = [2 ** i for i in range(depth)]
    return np.concatenate(
        [np.sin(b * np.pi * x64) for b in bases]
        + [np.cos(b * np.pi * x64) for b in bases], axis=-1)


if __name__ == "__main__":
    key = jax.random.PRNGKey(0)
    # batch=2, seq=64, in_dim=2 (2-D coordinates); depth=10 -> out_dim=40
    x = jax.random.uniform(key, (2, 64, 2), dtype=jnp.float32,
                           minval=-1.0, maxval=1.0)

    out = jax.block_until_ready(
        nerf_positional_encoding(x, depth=10, sine_type="lin_sine"))
    assert out.shape == (2, 64, 40)
    assert not bool(jnp.isnan(out).any())      # mirrors the module's assert
    ref = _reference_np(np.asarray(x), depth=10, sine_type="lin_sine")
    err = float(np.max(np.abs(np.asarray(out) - ref)))
    assert np.allclose(np.asarray(out), ref, atol=2e-5, rtol=2e-5), err

    # exp_sine (double-angle + periodic reseed) path.
    out_e = jax.block_until_ready(
        nerf_positional_encoding(x, depth=6, sine_type="exp_sine"))
    assert out_e.shape == (2, 64, 24)
    assert not bool(jnp.isnan(out_e).any())
    ref_e = _reference_np(np.asarray(x), depth=6, sine_type="exp_sine")
    err_e = float(np.max(np.abs(np.asarray(out_e) - ref_e)))
    assert np.allclose(np.asarray(out_e), ref_e, atol=1e-4, rtol=1e-4), err_e

    # Ragged / non-tile-aligned shape exercises partial-block handling (no pad).
    x3 = jax.random.uniform(jax.random.PRNGKey(1), (3, 5, 2), dtype=jnp.float32,
                            minval=-1.0, maxval=1.0)
    out3 = jax.block_until_ready(
        nerf_positional_encoding(x3, depth=10, sine_type="lin_sine"))
    assert out3.shape == (3, 5, 40)
    ref3 = _reference_np(np.asarray(x3), depth=10, sine_type="lin_sine")
    assert np.allclose(np.asarray(out3), ref3, atol=2e-5, rtol=2e-5)

    print("KERNEL_OK")
</pallas_src>

<mosaic_0001>
module attributes {stable_mosaic.version = 11 : i64} {
  func.func @_pe_kernel(%arg0: i32, %arg1: memref<2x128xf32, #tpu.memory_space<vmem>>, %arg2: memref<128x40xf32, #tpu.memory_space<vmem>>, %arg3: memref<40x128xf32, #tpu.memory_space<vmem>>) attributes {dimension_semantics = [#tpu.dimension_semantics<parallel>], iteration_bounds = array<i64: 1>, scalar_prefetch = 0 : i64, scratch_operands = 1 : i64, tpu.core_type = #tpu.core_type<tc>, window_params = [{transform_indices = @transform_0, window_bounds = array<i64: 2, 128>}, {transform_indices = @transform_1, window_bounds = array<i64: 128, 40>}]} {
    %c0 = arith.constant 0 : index
    %c0_0 = arith.constant 0 : index
    %0 = vector.load %arg1[%c0, %c0_0] : memref<2x128xf32, #tpu.memory_space<vmem>>, vector<2x128xf32>
    %cst = arith.constant 3.14159274 : f32
    %1 = vector.broadcast %cst : f32 to vector<2x128xf32>
    %2 = arith.mulf %1, %0 : vector<2x128xf32>
    %3 = math.sin %2 : vector<2x128xf32>
    %4 = math.cos %2 : vector<2x128xf32>
    %c0_1 = arith.constant 0 : index
    %c0_2 = arith.constant 0 : index
    %5 = vector.load %arg3[%c0_1, %c0_2] : memref<40x128xf32, #tpu.memory_space<vmem>>, vector<2x128xf32>
    tpu.vector_store %arg3[%c0_1, %c0_2], %3 {strides = array<i32>} : memref<40x128xf32, #tpu.memory_space<vmem>>, vector<2x128xf32>,
    %c20 = arith.constant 20 : index
    %c0_3 = arith.constant 0 : index
    %6 = vector.load %arg3[%c20, %c0_3] : memref<40x128xf32, #tpu.memory_space<vmem>>, vector<2x128xf32>
    tpu.vector_store %arg3[%c20, %c0_3], %4 {strides = array<i32>} : memref<40x128xf32, #tpu.memory_space<vmem>>, vector<2x128xf32>,
    %7 = arith.mulf %3, %4 : vector<2x128xf32>
    %8 = arith.mulf %4, %3 : vector<2x128xf32>
    %9 = arith.addf %7, %8 : vector<2x128xf32>
    %10 = arith.mulf %4, %4 : vector<2x128xf32>
    %11 = arith.mulf %3, %3 : vector<2x128xf32>
    %12 = arith.subf %10, %11 : vector<2x128xf32>
    %c2 = arith.constant 2 : index
    %c0_4 = arith.constant 0 : index
    %13 = vector.load %arg3[%c2, %c0_4] : memref<40x128xf32, #tpu.memory_space<vmem>>, vector<2x128xf32>
    tpu.vector_store %arg3[%c2, %c0_4], %9 {strides = array<i32>} : memref<40x128xf32, #tpu.memory_space<vmem>>, vector<2x128xf32>,
    %c22 = arith.constant 22 : index
    %c0_5 = arith.constant 0 : index
    %14 = vector.load %arg3[%c22, %c0_5] : memref<40x128xf32, #tpu.memory_space<vmem>>, vector<2x128xf32>
    tpu.vector_store %arg3[%c22, %c0_5], %12 {strides = array<i32>} : memref<40x128xf32, #tpu.memory_space<vmem>>, vector<2x128xf32>,
    %15 = arith.mulf %9, %4 : vector<2x128xf32>
    %16 = arith.mulf %12, %3 : vector<2x128xf32>
    %17 = arith.addf %15, %16 : vector<2x128xf32>
    %18 = arith.mulf %12, %4 : vector<2x128xf32>
    %19 = arith.mulf %9, %3 : vector<2x128xf32>
    %20 = arith.subf %18, %19 : vector<2x128xf32>
    %c4 = arith.constant 4 : index
    %c0_6 = arith.constant 0 : index
    %21 = vector.load %arg3[%c4, %c0_6] : memref<40x128xf32, #tpu.memory_space<vmem>>, vector<2x128xf32>
    tpu.vector_store %arg3[%c4, %c0_6], %17 {strides = array<i32>} : memref<40x128xf32, #tpu.memory_space<vmem>>, vector<2x128xf32>,
    %c24 = arith.constant 24 : index
    %c0_7 = arith.constant 0 : index
    %22 = vector.load %arg3[%c24, %c0_7] : memref<40x128xf32, #tpu.memory_space<vmem>>, vector<2x128xf32>
    tpu.vector_store %arg3[%c24, %c0_7], %20 {strides = array<i32>} : memref<40x128xf32, #tpu.memory_space<vmem>>, vector<2x128xf32>,
    %23 = arith.mulf %17, %4 : vector<2x128xf32>
    %24 = arith.mulf %20, %3 : vector<2x128xf32>
    %25 = arith.addf %23, %24 : vector<2x128xf32>
    %26 = arith.mulf %20, %4 : vector<2x128xf32>
    %27 = arith.mulf %17, %3 : vector<2x128xf32>
    %28 = arith.subf %26, %27 : vector<2x128xf32>
    %c6 = arith.constant 6 : index
    %c0_8 = arith.constant 0 : index
    %29 = vector.load %arg3[%c6, %c0_8] : memref<40x128xf32, #tpu.memory_space<vmem>>, vector<2x128xf32>
    tpu.vector_store %arg3[%c6, %c0_8], %25 {strides = array<i32>} : memref<40x128xf32, #tpu.memory_space<vmem>>, vector<2x128xf32>,
    %c26 = arith.constant 26 : index
    %c0_9 = arith.constant 0 : index
    %30 = vector.load %arg3[%c26, %c0_9] : memref<40x128xf32, #tpu.memory_space<vmem>>, vector<2x128xf32>
    tpu.vector_store %arg3[%c26, %c0_9], %28 {strides = array<i32>} : memref<40x128xf32, #tpu.memory_space<vmem>>, vector<2x128xf32>,
    %31 = arith.mulf %25, %4 : vector<2x128xf32>
    %32 = arith.mulf %28, %3 : vector<2x128xf32>
    %33 = arith.addf %31, %32 : vector<2x128xf32>
    %34 = arith.mulf %28, %4 : vector<2x128xf32>
    %35 = arith.mulf %25, %3 : vector<2x128xf32>
    %36 = arith.subf %34, %35 : vector<2x128xf32>
    %c8 = arith.constant 8 : index
    %c0_10 = arith.constant 0 : index
    %37 = vector.load %arg3[%c8, %c0_10] : memref<40x128xf32, #tpu.memory_space<vmem>>, vector<2x128xf32>
    tpu.vector_store %arg3[%c8, %c0_10], %33 {strides = array<i32>} : memref<40x128xf32, #tpu.memory_space<vmem>>, vector<2x128xf32>,
    %c28 = arith.constant 28 : index
    %c0_11 = arith.constant 0 : index
    %38 = vector.load %arg3[%c28, %c0_11] : memref<40x128xf32, #tpu.memory_space<vmem>>, vector<2x128xf32>
    tpu.vector_store %arg3[%c28, %c0_11], %36 {strides = array<i32>} : memref<40x128xf32, #tpu.memory_space<vmem>>, vector<2x128xf32>,
    %39 = arith.mulf %33, %4 : vector<2x128xf32>
    %40 = arith.mulf %36, %3 : vector<2x128xf32>
    %41 = arith.addf %39, %40 : vector<2x128xf32>
    %42 = arith.mulf %36, %4 : vector<2x128xf32>
    %43 = arith.mulf %33, %3 : vector<2x128xf32>
    %44 = arith.subf %42, %43 : vector<2x128xf32>
    %c10 = arith.constant 10 : index
    %c0_12 = arith.constant 0 : index
    %45 = vector.load %arg3[%c10, %c0_12] : memref<40x128xf32, #tpu.memory_space<vmem>>, vector<2x128xf32>
    tpu.vector_store %arg3[%c10, %c0_12], %41 {strides = array<i32>} : memref<40x128xf32, #tpu.memory_space<vmem>>, vector<2x128xf32>,
    %c30 = arith.constant 30 : index
    %c0_13 = arith.constant 0 : index
    %46 = vector.load %arg3[%c30, %c0_13] : memref<40x128xf32, #tpu.memory_space<vmem>>, vector<2x128xf32>
    tpu.vector_store %arg3[%c30, %c0_13], %44 {strides = array<i32>} : memref<40x128xf32, #tpu.memory_space<vmem>>, vector<2x128xf32>,
    %47 = arith.mulf %41, %4 : vector<2x128xf32>
    %48 = arith.mulf %44, %3 : vector<2x128xf32>
    %49 = arith.addf %47, %48 : vector<2x128xf32>
    %50 = arith.mulf %44, %4 : vector<2x128xf32>
    %51 = arith.mulf %41, %3 : vector<2x128xf32>
    %52 = arith.subf %50, %51 : vector<2x128xf32>
    %c12 = arith.constant 12 : index
    %c0_14 = arith.constant 0 : index
    %53 = vector.load %arg3[%c12, %c0_14] : memref<40x128xf32, #tpu.memory_space<vmem>>, vector<2x128xf32>
    tpu.vector_store %arg3[%c12, %c0_14], %49 {strides = array<i32>} : memref<40x128xf32, #tpu.memory_space<vmem>>, vector<2x128xf32>,
    %c32 = arith.constant 32 : index
    %c0_15 = arith.constant 0 : index
    %54 = vector.load %arg3[%c32, %c0_15] : memref<40x128xf32, #tpu.memory_space<vmem>>, vector<2x128xf32>
    tpu.vector_store %arg3[%c32, %c0_15], %52 {strides = array<i32>} : memref<40x128xf32, #tpu.memory_space<vmem>>, vector<2x128xf32>,
    %55 = arith.mulf %49, %4 : vector<2x128xf32>
    %56 = arith.mulf %52, %3 : vector<2x128xf32>
    %57 = arith.addf %55, %56 : vector<2x128xf32>
    %58 = arith.mulf %52, %4 : vector<2x128xf32>
    %59 = arith.mulf %49, %3 : vector<2x128xf32>
    %60 = arith.subf %58, %59 : vector<2x128xf32>
    %c14 = arith.constant 14 : index
    %c0_16 = arith.constant 0 : index
    %61 = vector.load %arg3[%c14, %c0_16] : memref<40x128xf32, #tpu.memory_space<vmem>>, vector<2x128xf32>
    tpu.vector_store %arg3[%c14, %c0_16], %57 {strides = array<i32>} : memref<40x128xf32, #tpu.memory_space<vmem>>, vector<2x128xf32>,
    %c34 = arith.constant 34 : index
    %c0_17 = arith.constant 0 : index
    %62 = vector.load %arg3[%c34, %c0_17] : memref<40x128xf32, #tpu.memory_space<vmem>>, vector<2x128xf32>
    tpu.vector_store %arg3[%c34, %c0_17], %60 {strides = array<i32>} : memref<40x128xf32, #tpu.memory_space<vmem>>, vector<2x128xf32>,
    %63 = arith.mulf %57, %4 : vector<2x128xf32>
    %64 = arith.mulf %60, %3 : vector<2x128xf32>
    %65 = arith.addf %63, %64 : vector<2x128xf32>
    %66 = arith.mulf %60, %4 : vector<2x128xf32>
    %67 = arith.mulf %57, %3 : vector<2x128xf32>
    %68 = arith.subf %66, %67 : vector<2x128xf32>
    %c16 = arith.constant 16 : index
    %c0_18 = arith.constant 0 : index
    %69 = vector.load %arg3[%c16, %c0_18] : memref<40x128xf32, #tpu.memory_space<vmem>>, vector<2x128xf32>
    tpu.vector_store %arg3[%c16, %c0_18], %65 {strides = array<i32>} : memref<40x128xf32, #tpu.memory_space<vmem>>, vector<2x128xf32>,
    %c36 = arith.constant 36 : index
    %c0_19 = arith.constant 0 : index
    %70 = vector.load %arg3[%c36, %c0_19] : memref<40x128xf32, #tpu.memory_space<vmem>>, vector<2x128xf32>
    tpu.vector_store %arg3[%c36, %c0_19], %68 {strides = array<i32>} : memref<40x128xf32, #tpu.memory_space<vmem>>, vector<2x128xf32>,
    %71 = arith.mulf %65, %4 : vector<2x128xf32>
    %72 = arith.mulf %68, %3 : vector<2x128xf32>
    %73 = arith.addf %71, %72 : vector<2x128xf32>
    %74 = arith.mulf %68, %4 : vector<2x128xf32>
    %75 = arith.mulf %65, %3 : vector<2x128xf32>
    %76 = arith.subf %74, %75 : vector<2x128xf32>
    %c18 = arith.constant 18 : index
    %c0_20 = arith.constant 0 : index
    %77 = vector.load %arg3[%c18, %c0_20] : memref<40x128xf32, #tpu.memory_space<vmem>>, vector<2x128xf32>
    tpu.vector_store %arg3[%c18, %c0_20], %73 {strides = array<i32>} : memref<40x128xf32, #tpu.memory_space<vmem>>, vector<2x128xf32>,
    %c38 = arith.constant 38 : index
    %c0_21 = arith.constant 0 : index
    %78 = vector.load %arg3[%c38, %c0_21] : memref<40x128xf32, #tpu.memory_space<vmem>>, vector<2x128xf32>
    tpu.vector_store %arg3[%c38, %c0_21], %76 {strides = array<i32>} : memref<40x128xf32, #tpu.memory_space<vmem>>, vector<2x128xf32>,
    %c0_22 = arith.constant 0 : index
    %c0_23 = arith.constant 0 : index
    %79 = vector.load %arg3[%c0_22, %c0_23] : memref<40x128xf32, #tpu.memory_space<vmem>>, vector<40x128xf32>
    %80 = tpu.transpose %79, [1, 0] : vector<40x128xf32> -> vector<128x40xf32>
    %c0_24 = arith.constant 0 : index
    %c0_25 = arith.constant 0 : index
    %81 = vector.load %arg2[%c0_24, %c0_25] : memref<128x40xf32, #tpu.memory_space<vmem>>, vector<128x40xf32>
    tpu.vector_store %arg2[%c0_24, %c0_25], %80 {strides = array<i32>} : memref<128x40xf32, #tpu.memory_space<vmem>>, vector<128x40xf32>,
    return
  }
  func.func @transform_0(%arg0: i32) -> (i32, i32) {
    %c0_i32 = arith.constant 0 : i32
    %c0_i32_0 = arith.constant 0 : i32
    return %c0_i32, %arg0 : i32, i32
  }
  func.func @transform_1(%arg0: i32) -> (i32, i32) {
    %c0_i32 = arith.constant 0 : i32
    %c0_i32_0 = arith.constant 0 : i32
    return %arg0, %c0_i32 : i32, i32
  }
}

module attributes {stable_mosaic.version = 11 : i64} {
  func.func @_pe_kernel(%arg0: i32, %arg1: memref<2x128xf32, #tpu.memory_space<vmem>>, %arg2: memref<40x128xf32, #tpu.memory_space<vmem>>) attributes {dimension_semantics = [#tpu.dimension_semantics<parallel>], iteration_bounds = array<i64: 1>, scalar_prefetch = 0 : i64, scratch_operands = 0 : i64, tpu.core_type = #tpu.core_type<tc>, window_params = [{transform_indices = @transform_0, window_bounds = array<i64: 2, 128>}, {transform_indices = @transform_1, window_bounds = array<i64: 40, 128>}]} {
    %c0 = arith.constant 0 : index
    %c0_0 = arith.constant 0 : index
    %0 = vector.load %arg1[%c0, %c0_0] : memref<2x128xf32, #tpu.memory_space<vmem>>, vector<2x128xf32>
    %cst = arith.constant 3.14159274 : f32
    %1 = vector.broadcast %cst : f32 to vector<2x128xf32>
    %2 = arith.mulf %1, %0 : vector<2x128xf32>
    %3 = math.sin %2 : vector<2x128xf32>
    %4 = math.cos %2 : vector<2x128xf32>
    %c0_1 = arith.constant 0 : index
    %c0_2 = arith.constant 0 : index
    %5 = vector.load %arg2[%c0_1, %c0_2] : memref<40x128xf32, #tpu.memory_space<vmem>>, vector<2x128xf32>
    tpu.vector_store %arg2[%c0_1, %c0_2], %3 {strides = array<i32>} : memref<40x128xf32, #tpu.memory_space<vmem>>, vector<2x128xf32>,
    %c20 = arith.constant 20 : index
    %c0_3 = arith.constant 0 : index
    %6 = vector.load %arg2[%c20, %c0_3] : memref<40x128xf32, #tpu.memory_space<vmem>>, vector<2x128xf32>
    tpu.vector_store %arg2[%c20, %c0_3], %4 {strides = array<i32>} : memref<40x128xf32, #tpu.memory_space<vmem>>, vector<2x128xf32>,
    %7 = arith.mulf %3, %4 : vector<2x128xf32>
    %8 = arith.mulf %4, %3 : vector<2x128xf32>
    %9 = arith.addf %7, %8 : vector<2x128xf32>
    %10 = arith.mulf %4, %4 : vector<2x128xf32>
    %11 = arith.mulf %3, %3 : vector<2x128xf32>
    %12 = arith.subf %10, %11 : vector<2x128xf32>
    %c2 = arith.constant 2 : index
    %c0_4 = arith.constant 0 : index
    %13 = vector.load %arg2[%c2, %c0_4] : memref<40x128xf32, #tpu.memory_space<vmem>>, vector<2x128xf32>
    tpu.vector_store %arg2[%c2, %c0_4], %9 {strides = array<i32>} : memref<40x128xf32, #tpu.memory_space<vmem>>, vector<2x128xf32>,
    %c22 = arith.constant 22 : index
    %c0_5 = arith.constant 0 : index
    %14 = vector.load %arg2[%c22, %c0_5] : memref<40x128xf32, #tpu.memory_space<vmem>>, vector<2x128xf32>
    tpu.vector_store %arg2[%c22, %c0_5], %12 {strides = array<i32>} : memref<40x128xf32, #tpu.memory_space<vmem>>, vector<2x128xf32>,
    %15 = arith.mulf %9, %4 : vector<2x128xf32>
    %16 = arith.mulf %12, %3 : vector<2x128xf32>
    %17 = arith.addf %15, %16 : vector<2x128xf32>
    %18 = arith.mulf %12, %4 : vector<2x128xf32>
    %19 = arith.mulf %9, %3 : vector<2x128xf32>
    %20 = arith.subf %18, %19 : vector<2x128xf32>
    %c4 = arith.constant 4 : index
    %c0_6 = arith.constant 0 : index
    %21 = vector.load %arg2[%c4, %c0_6] : memref<40x128xf32, #tpu.memory_space<vmem>>, vector<2x128xf32>
    tpu.vector_store %arg2[%c4, %c0_6], %17 {strides = array<i32>} : memref<40x128xf32, #tpu.memory_space<vmem>>, vector<2x128xf32>,
    %c24 = arith.constant 24 : index
    %c0_7 = arith.constant 0 : index
    %22 = vector.load %arg2[%c24, %c0_7] : memref<40x128xf32, #tpu.memory_space<vmem>>, vector<2x128xf32>
    tpu.vector_store %arg2[%c24, %c0_7], %20 {strides = array<i32>} : memref<40x128xf32, #tpu.memory_space<vmem>>, vector<2x128xf32>,
    %23 = arith.mulf %17, %4 : vector<2x128xf32>
    %24 = arith.mulf %20, %3 : vector<2x128xf32>
    %25 = arith.addf %23, %24 : vector<2x128xf32>
    %26 = arith.mulf %20, %4 : vector<2x128xf32>
    %27 = arith.mulf %17, %3 : vector<2x128xf32>
    %28 = arith.subf %26, %27 : vector<2x128xf32>
    %c6 = arith.constant 6 : index
    %c0_8 = arith.constant 0 : index
    %29 = vector.load %arg2[%c6, %c0_8] : memref<40x128xf32, #tpu.memory_space<vmem>>, vector<2x128xf32>
    tpu.vector_store %arg2[%c6, %c0_8], %25 {strides = array<i32>} : memref<40x128xf32, #tpu.memory_space<vmem>>, vector<2x128xf32>,
    %c26 = arith.constant 26 : index
    %c0_9 = arith.constant 0 : index
    %30 = vector.load %arg2[%c26, %c0_9] : memref<40x128xf32, #tpu.memory_space<vmem>>, vector<2x128xf32>
    tpu.vector_store %arg2[%c26, %c0_9], %28 {strides = array<i32>} : memref<40x128xf32, #tpu.memory_space<vmem>>, vector<2x128xf32>,
    %31 = arith.mulf %25, %4 : vector<2x128xf32>
    %32 = arith.mulf %28, %3 : vector<2x128xf32>
    %33 = arith.addf %31, %32 : vector<2x128xf32>
    %34 = arith.mulf %28, %4 : vector<2x128xf32>
    %35 = arith.mulf %25, %3 : vector<2x128xf32>
    %36 = arith.subf %34, %35 : vector<2x128xf32>
    %c8 = arith.constant 8 : index
    %c0_10 = arith.constant 0 : index
    %37 = vector.load %arg2[%c8, %c0_10] : memref<40x128xf32, #tpu.memory_space<vmem>>, vector<2x128xf32>
    tpu.vector_store %arg2[%c8, %c0_10], %33 {strides = array<i32>} : memref<40x128xf32, #tpu.memory_space<vmem>>, vector<2x128xf32>,
    %c28 = arith.constant 28 : index
    %c0_11 = arith.constant 0 : index
    %38 = vector.load %arg2[%c28, %c0_11] : memref<40x128xf32, #tpu.memory_space<vmem>>, vector<2x128xf32>
    tpu.vector_store %arg2[%c28, %c0_11], %36 {strides = array<i32>} : memref<40x128xf32, #tpu.memory_space<vmem>>, vector<2x128xf32>,
    %39 = arith.mulf %33, %4 : vector<2x128xf32>
    %40 = arith.mulf %36, %3 : vector<2x128xf32>
    %41 = arith.addf %39, %40 : vector<2x128xf32>
    %42 = arith.mulf %36, %4 : vector<2x128xf32>
    %43 = arith.mulf %33, %3 : vector<2x128xf32>
    %44 = arith.subf %42, %43 : vector<2x128xf32>
    %c10 = arith.constant 10 : index
    %c0_12 = arith.constant 0 : index
    %45 = vector.load %arg2[%c10, %c0_12] : memref<40x128xf32, #tpu.memory_space<vmem>>, vector<2x128xf32>
    tpu.vector_store %arg2[%c10, %c0_12], %41 {strides = array<i32>} : memref<40x128xf32, #tpu.memory_space<vmem>>, vector<2x128xf32>,
    %c30 = arith.constant 30 : index
    %c0_13 = arith.constant 0 : index
    %46 = vector.load %arg2[%c30, %c0_13] : memref<40x128xf32, #tpu.memory_space<vmem>>, vector<2x128xf32>
    tpu.vector_store %arg2[%c30, %c0_13], %44 {strides = array<i32>} : memref<40x128xf32, #tpu.memory_space<vmem>>, vector<2x128xf32>,
    %47 = arith.mulf %41, %4 : vector<2x128xf32>
    %48 = arith.mulf %44, %3 : vector<2x128xf32>
    %49 = arith.addf %47, %48 : vector<2x128xf32>
    %50 = arith.mulf %44, %4 : vector<2x128xf32>
    %51 = arith.mulf %41, %3 : vector<2x128xf32>
    %52 = arith.subf %50, %51 : vector<2x128xf32>
    %c12 = arith.constant 12 : index
    %c0_14 = arith.constant 0 : index
    %53 = vector.load %arg2[%c12, %c0_14] : memref<40x128xf32, #tpu.memory_space<vmem>>, vector<2x128xf32>
    tpu.vector_store %arg2[%c12, %c0_14], %49 {strides = array<i32>} : memref<40x128xf32, #tpu.memory_space<vmem>>, vector<2x128xf32>,
    %c32 = arith.constant 32 : index
    %c0_15 = arith.constant 0 : index
    %54 = vector.load %arg2[%c32, %c0_15] : memref<40x128xf32, #tpu.memory_space<vmem>>, vector<2x128xf32>
    tpu.vector_store %arg2[%c32, %c0_15], %52 {strides = array<i32>} : memref<40x128xf32, #tpu.memory_space<vmem>>, vector<2x128xf32>,
    %55 = arith.mulf %49, %4 : vector<2x128xf32>
    %56 = arith.mulf %52, %3 : vector<2x128xf32>
    %57 = arith.addf %55, %56 : vector<2x128xf32>
    %58 = arith.mulf %52, %4 : vector<2x128xf32>
    %59 = arith.mulf %49, %3 : vector<2x128xf32>
    %60 = arith.subf %58, %59 : vector<2x128xf32>
    %c14 = arith.constant 14 : index
    %c0_16 = arith.constant 0 : index
    %61 = vector.load %arg2[%c14, %c0_16] : memref<40x128xf32, #tpu.memory_space<vmem>>, vector<2x128xf32>
    tpu.vector_store %arg2[%c14, %c0_16], %57 {strides = array<i32>} : memref<40x128xf32, #tpu.memory_space<vmem>>, vector<2x128xf32>,
    %c34 = arith.constant 34 : index
    %c0_17 = arith.constant 0 : index
    %62 = vector.load %arg2[%c34, %c0_17] : memref<40x128xf32, #tpu.memory_space<vmem>>, vector<2x128xf32>
    tpu.vector_store %arg2[%c34, %c0_17], %60 {strides = array<i32>} : memref<40x128xf32, #tpu.memory_space<vmem>>, vector<2x128xf32>,
    %63 = arith.mulf %57, %4 : vector<2x128xf32>
    %64 = arith.mulf %60, %3 : vector<2x128xf32>
    %65 = arith.addf %63, %64 : vector<2x128xf32>
    %66 = arith.mulf %60, %4 : vector<2x128xf32>
    %67 = arith.mulf %57, %3 : vector<2x128xf32>
    %68 = arith.subf %66, %67 : vector<2x128xf32>
    %c16 = arith.constant 16 : index
    %c0_18 = arith.constant 0 : index
    %69 = vector.load %arg2[%c16, %c0_18] : memref<40x128xf32, #tpu.memory_space<vmem>>, vector<2x128xf32>
    tpu.vector_store %arg2[%c16, %c0_18], %65 {strides = array<i32>} : memref<40x128xf32, #tpu.memory_space<vmem>>, vector<2x128xf32>,
    %c36 = arith.constant 36 : index
    %c0_19 = arith.constant 0 : index
    %70 = vector.load %arg2[%c36, %c0_19] : memref<40x128xf32, #tpu.memory_space<vmem>>, vector<2x128xf32>
    tpu.vector_store %arg2[%c36, %c0_19], %68 {strides = array<i32>} : memref<40x128xf32, #tpu.memory_space<vmem>>, vector<2x128xf32>,
    %71 = arith.mulf %65, %4 : vector<2x128xf32>
    %72 = arith.mulf %68, %3 : vector<2x128xf32>
    %73 = arith.addf %71, %72 : vector<2x128xf32>
    %74 = arith.mulf %68, %4 : vector<2x128xf32>
    %75 = arith.mulf %65, %3 : vector<2x128xf32>
    %76 = arith.subf %74, %75 : vector<2x128xf32>
    %c18 = arith.constant 18 : index
    %c0_20 = arith.constant 0 : index
    %77 = vector.load %arg2[%c18, %c0_20] : memref<40x128xf32, #tpu.memory_space<vmem>>, vector<2x128xf32>
    tpu.vector_store %arg2[%c18, %c0_20], %73 {strides = array<i32>} : memref<40x128xf32, #tpu.memory_space<vmem>>, vector<2x128xf32>,
    %c38 = arith.constant 38 : index
    %c0_21 = arith.constant 0 : index
    %78 = vector.load %arg2[%c38, %c0_21] : memref<40x128xf32, #tpu.memory_space<vmem>>, vector<2x128xf32>
    tpu.vector_store %arg2[%c38, %c0_21], %76 {strides = array<i32>} : memref<40x128xf32, #tpu.memory_space<vmem>>, vector<2x128xf32>,
    return
  }
  func.func @transform_0(%arg0: i32) -> (i32, i32) {
    %c0_i32 = arith.constant 0 : i32
    %c0_i32_0 = arith.constant 0 : i32
    return %c0_i32, %arg0 : i32, i32
  }
  func.func @transform_1(%arg0: i32) -> (i32, i32) {
    %c0_i32 = arith.constant 0 : i32
    %c0_i32_0 = arith.constant 0 : i32
    return %c0_i32, %arg0 : i32, i32
  }
}

</mosaic_0001>

<llo_original>
// kernel: tpu_custom_call.1
$region0: #{tpu_custom_call.1}
  #allocation0 [shape = 'u32[]', space=smem, size = 0x4, offset = 0x4, fixed_abs, tag = 'smem constant byte address 0x4 - core index']
  #allocation1 [shape = 'u32[72,128]{1,0:T(1,128)}', space=vmem, size = 0x9000, scoped, tag = 'internal scratch']
  #allocation2 [shape = 'f32[40,128]{1,0:T(8,128)}', space=vmem, size = 0x5000, scoped, tag = 'scratch operand']
  %s0 = inlined_call_operand.hbm [shape: f32[2,128], index: 0, kind: input, shape index: {}]
  %s1 = inlined_call_operand.vmem [shape: f32[128,40], index: 1, kind: output, shape index: {}]
  %s2 = sld [smem:[#allocation0]]
  $region18: #{tpu_custom_call.1} parent=0
    _
  %s4 = ssub.s32 1, %s2
  %s5 = scalar_select 0, %s4, %s2
  $region1: #{tpu_custom_call.1} parent=0
    #allocation3 [shape = 'u8[1024]{0}', space=vmem, size = 0x400, scoped, tag = 'input window, operand 0, single buffered']
    #allocation4 [shape = 's32[1]{0}', space=sflag, size = 0x4, scoped, tag = 'scoped memory for tpu_custom_call.1']
    %6 = vsyncpa [#allocation4], 0
    // Predicated region
    $region2: #{tpu_custom_call.1} parent=1 // pred_check
      _
    $region3: #{tpu_custom_call.1} parent=1 // pred_check_branch
      %8 = sbr.rel (0) target = $region5
    $region4: #{tpu_custom_call.1} parent=1 // pred_region
      %10 = vsyncadd [#allocation4], 0
      %s12 = sshll.u32 %s0, 4
      %s13 = int_to_ptr.hbm [resolvable:$true] %s12
      %s14 = sshll.u32 [#allocation3], 4
      %s15 = int_to_ptr.vmem [resolvable:$true] %s14
      %17 = dma.hbm_to_vmem [thread:$0]  %s13, 32, %s15, [#allocation4]
    $region5: #{tpu_custom_call.1} parent=1 // pred_fallthru
      _
    // Predicated region
    $region6: #{tpu_custom_call.1} parent=1 // pred_check
      _
    $region7: #{tpu_custom_call.1} parent=1 // pred_check_branch
      %19 = sbr.rel (0) target = $region9
    $region8: #{tpu_custom_call.1} parent=1 // pred_region
      %21 = dma.done [#allocation4], 32
    $region9: #{tpu_custom_call.1} parent=1 // pred_fallthru
      _
    %v22 = vld [vmem:[#allocation3] sm:$0x3]
    %v23 = vmul.f32 %v22, 3.1415927
    %v24 = vand.u32 2147483647, %v23
    %vm25 = vcmp.le.f32.partialorder %v24, 0.7853982
    %vm26 = vcmp.lt.s32.totalorder %v23, 0
    %v27 = vand.u32 %v23, 2139095040
    %v28 = vshrl.u32 %v27, 23
    %v29 = vsub.s32 %v28, 127
    %v30 = vand.u32 2147483647, %v23
    %v31 = vand.u32 %v30, 8388607
    %v32 = vor.u32 %v31, 8388608
    %v33 = vsub.s32 0, %v32
    %v34 = vadd.s32 %v29, 1
    %vm35 = vcmp.gt.s32.totalorder %v34, 0
    %v36 = vsel %vm35, %v34, 0
    %v37 = vshrl.u32 %v36, 5
    %v38 = vand.u32 %v36, 31
    %v39 = vsub.s32 32, %v38
    %v40 = vshrl.u32 683565275, %v39
    %v41 = vshll.u32 683565275, %v38
    %v42 = vshrl.u32 2475754826, %v39
    %v43 = vor.u32 %v41, %v42
    %v44 = vshll.u32 2475754826, %v38
    %v45 = vshrl.u32 2131351028, %v39
    %v46 = vor.u32 %v44, %v45
    %v47 = vshll.u32 2131351028, %v38
    %v48 = vshrl.u32 2102212464, %v39
    %v49 = vor.u32 %v47, %v48
    %v50 = vshll.u32 2102212464, %v38
    %v51 = vshrl.u32 920167782, %v39
    %v52 = vor.u32 %v50, %v51
    %v53 = vshll.u32 920167782, %v38
    %v54 = vshrl.u32 1326507024, %v39
    %v55 = vor.u32 %v53, %v54
    %vm56 = vcmp.lt.s32.totalorder %v37, 1
    %vm57 = vcmp.lt.s32.totalorder %v37, 2
    %vm58 = vcmp.lt.s32.totalorder %v37, 3
    %vm59 = vcmp.lt.s32.totalorder %v37, 4
    %v60 = vsel %vm56, %v40, %v43
    %v61 = vsel %vm59, %v49, 2102212464
    %v62 = vsel %vm58, %v46, %v61
    %v63 = vsel %vm57, %v60, %v62
    %v64 = vsel %vm56, %v43, %v46
    %v65 = vsel %vm59, %v52, 920167782
    %v66 = vsel %vm58, %v49, %v65
    %v67 = vsel %vm57, %v64, %v66
    %v68 = vsel %vm56, %v46, %v49
    %v69 = vsel %vm59, %v55, 1326507024
    %v70 = vsel %vm58, %v52, %v69
    %v71 = vsel %vm57, %v68, %v70
    %v72 = vshll.u32 %v32, 8
    %v73 = vand.u32 %v72, 65535
    %v74 = vshrl.u32 %v72, 16
    %v75 = vand.u32 %v71, 65535
    %v76 = vshrl.u32 %v71, 16
    %v77 = vmul.u32 %v73, %v75
    %v78 = vmul.u32 %v73, %v76
    %v79 = vmul.u32 %v74, %v75
    %v80 = vmul.u32 %v74, %v76
    %v81 = vshll.u32 %v78, 16
    %v82 = vshrl.u32 %v78, 16
    %v83 = vshll.u32 %v79, 16
    %v84 = vshrl.u32 %v79, 16
    %vm85 = vc.u32 %v77, %v81
    %v86 = vsel %vm85, 1, 0
    %v87 = vadd.s32 %v77, %v81
    %v88 = vadd.s32 %v80, %v86
    %vm89 = vc.u32 %v87, %v83
    %v90 = vsel %vm89, 1, 0
    %v91 = vadd.s32 %v87, %v83
    %v92 = vadd.s32 %v88, %v90
    %v93 = vadd.s32 %v92, %v82
    %v94 = vadd.s32 %v93, %v84
    %v95 = vand.u32 %v72, 65535
    %v96 = vshrl.u32 %v72, 16
    %v97 = vand.u32 %v67, 65535
    %v98 = vshrl.u32 %v67, 16
    %v99 = vmul.u32 %v95, %v97
    %v100 = vmul.u32 %v95, %v98
    %v101 = vmul.u32 %v96, %v97
    %v102 = vmul.u32 %v96, %v98
    %v103 = vshll.u32 %v100, 16
    %v104 = vshrl.u32 %v100, 16
    %v105 = vshll.u32 %v101, 16
    %v106 = vshrl.u32 %v101, 16
    %vm107 = vc.u32 %v99, %v103
    %v108 = vsel %vm107, 1, 0
    %v109 = vadd.s32 %v99, %v103
    %v110 = vadd.s32 %v102, %v108
    %vm111 = vc.u32 %v109, %v105
    %v112 = vsel %vm111, 1, 0
    %v113 = vadd.s32 %v109, %v105
    %v114 = vadd.s32 %v110, %v112
    %v115 = vadd.s32 %v114, %v104
    %v116 = vadd.s32 %v115, %v106
    %v117 = vmul.u32 %v72, %v63
    %v118 = vadd.s32 %v94, %v113
    %vm119 = vc.u32 %v94, %v113
    %v120 = vadd.s32 %v116, 1
    %v121 = vsel %vm119, %v120, %v116
    %v122 = vadd.s32 %v117, %v121
    %v123 = vadd.s32 %v122, 536870912
    %v124 = vshrl.u32 %v123, 30
    %v125 = vshll.u32 %v124, 30
    %v126 = vsub.s32 %v122, %v125
    %vm127 = vcmp.lt.s32.totalorder %v126, 0
    %v128 = vsub.s32 0, %v126
    %v129 = vsel %vm127, %v128, %v126
    %v130 = vclz %v129
    %v131 = vsub.s32 %v130, 2
    %vm132 = vcmp.gt.s32.totalorder 0, %v131
    %v133 = vsel %vm132, 0, %v131
    %v134 = vsub.s32 32, %v133
    %v135 = vshll.u32 %v126, %v133
    %v136 = vshrl.u32 %v118, %v134
    %v137 = vor.u32 %v135, %v136
    %v138 = vsub.s32 4294967266, %v133
    %v139 = vadd.s32 %v138, 127
    %v140 = vshll.u32 %v139, 23
    %v141 = vor.u32 4788187, %v140
    %v142 = vand.u32 2147483647, %v141
    %v144 = vcvt.s32.f32 %v137
    %v145 = vmul.f32 %v144, %v142
    %v146 = vxor.u32 %v145, 2147483648
    %v147 = vsel %vm26, %v146, %v145
    %v148 = vsub.s32 4, %v124
    %v149 = vsel %vm26, %v148, %v124
    %v150 = vsel %vm25, %v23, %v147
    %v151 = vsel %vm25, 0, %v149
    %v152 = vmul.f32 %v150, %v150
    %v153 = vmul.f32 %v152, -0.001358992
    %v154 = vadd.f32 %v153, 0.041655596
    %v155 = vmul.f32 %v152, %v154
    %v156 = vadd.f32 %v155, -0.4999988
    %v157 = vmul.f32 %v152, %v156
    %v158 = vadd.f32 1.0, %v157
    %v159 = vmul.f32 %v150, %v150
    %v160 = vmul.f32 %v159, -0.00019511016
    %v161 = vadd.f32 %v160, 0.008332121
    %v162 = vmul.f32 %v159, %v161
    %v163 = vadd.f32 %v162, -0.16666654
    %v164 = vmul.f32 %v159, %v163
    %v165 = vadd.f32 %v164, 1.0
    %v166 = vmul.f32 %v165, %v150
    %vm167 = vweird.f32 %v23
    %v168 = vadd.s32 %v151, 3
    %v169 = vand.u32 %v168, 3
    %vm170 = vcmp.lt.s32.totalorder %v169, 2
    %vm171 = vcmp.eq.s32.totalorder %v169, 0
    %v172 = vxor.u32 %v166, 2147483648
    %v173 = vsel %vm171, %v158, %v172
    %vm174 = vcmp.eq.s32.totalorder %v169, 2
    %v175 = vxor.u32 %v158, 2147483648
    %v176 = vsel %vm174, %v175, %v166
    %v177 = vsel %vm170, %v173, %v176
    %v178 = vsel %vm167, nan, %v177
    %v179 = vand.u32 2147483647, %v23
    %vm180 = vcmp.le.f32.partialorder %v179, 0.7853982
    %vm181 = vcmp.lt.s32.totalorder %v23, 0
    %v182 = vand.u32 %v23, 2139095040
    %v183 = vshrl.u32 %v182, 23
    %v184 = vsub.s32 %v183, 127
    %v185 = vand.u32 2147483647, %v23
    %v186 = vand.u32 %v185, 8388607
    %v187 = vor.u32 %v186, 8388608
    %v188 = vsub.s32 0, %v187
    %v189 = vadd.s32 %v184, 1
    %vm190 = vcmp.gt.s32.totalorder %v189, 0
    %v191 = vsel %vm190, %v189, 0
    %v192 = vshrl.u32 %v191, 5
    %v193 = vand.u32 %v191, 31
    %v194 = vsub.s32 32, %v193
    %v195 = vshrl.u32 683565275, %v194
    %v196 = vshll.u32 683565275, %v193
    %v197 = vshrl.u32 2475754826, %v194
    %v198 = vor.u32 %v196, %v197
    %v199 = vshll.u32 2475754826, %v193
    %v200 = vshrl.u32 2131351028, %v194
    %v201 = vor.u32 %v199, %v200
    %v202 = vshll.u32 2131351028, %v193
    %v203 = vshrl.u32 2102212464, %v194
    %v204 = vor.u32 %v202, %v203
    %v205 = vshll.u32 2102212464, %v193
    %v206 = vshrl.u32 920167782, %v194
    %v207 = vor.u32 %v205, %v206
    %v208 = vshll.u32 920167782, %v193
    %v209 = vshrl.u32 1326507024, %v194
    %v210 = vor.u32 %v208, %v209
    %vm211 = vcmp.lt.s32.totalorder %v192, 1
    %vm212 = vcmp.lt.s32.totalorder %v192, 2
    %vm213 = vcmp.lt.s32.totalorder %v192, 3
    %vm214 = vcmp.lt.s32.totalorder %v192, 4
    %v215 = vsel %vm211, %v195, %v198
    %v216 = vsel %vm214, %v204, 2102212464
    %v217 = vsel %vm213, %v201, %v216
    %v218 = vsel %vm212, %v215, %v217
    %v219 = vsel %vm211, %v198, %v201
    %v220 = vsel %vm214, %v207, 920167782
    %v221 = vsel %vm213, %v204, %v220
    %v222 = vsel %vm212, %v219, %v221
    %v223 = vsel %vm211, %v201, %v204
    %v224 = vsel %vm214, %v210, 1326507024
    %v225 = vsel %vm213, %v207, %v224
    %v226 = vsel %vm212, %v223, %v225
    %v227 = vshll.u32 %v187, 8
    %v228 = vand.u32 %v227, 65535
    %v229 = vshrl.u32 %v227, 16
    %v230 = vand.u32 %v226, 65535
    %v231 = vshrl.u32 %v226, 16
    %v232 = vmul.u32 %v228, %v230
    %v233 = vmul.u32 %v228, %v231
    %v234 = vmul.u32 %v229, %v230
    %v235 = vmul.u32 %v229, %v231
    %v236 = vshll.u32 %v233, 16
    %v237 = vshrl.u32 %v233, 16
    %v238 = vshll.u32 %v234, 16
    %v239 = vshrl.u32 %v234, 16
    %vm240 = vc.u32 %v232, %v236
    %v241 = vsel %vm240, 1, 0
    %v242 = vadd.s32 %v232, %v236
    %v243 = vadd.s32 %v235, %v241
    %vm244 = vc.u32 %v242, %v238
    %v245 = vsel %vm244, 1, 0
    %v246 = vadd.s32 %v242, %v238
    %v247 = vadd.s32 %v243, %v245
    %v248 = vadd.s32 %v247, %v237
    %v249 = vadd.s32 %v248, %v239
    %v250 = vand.u32 %v227, 65535
    %v251 = vshrl.u32 %v227, 16
    %v252 = vand.u32 %v222, 65535
    %v253 = vshrl.u32 %v222, 16
    %v254 = vmul.u32 %v250, %v252
    %v255 = vmul.u32 %v250, %v253
    %v256 = vmul.u32 %v251, %v252
    %v257 = vmul.u32 %v251, %v253
    %v258 = vshll.u32 %v255, 16
    %v259 = vshrl.u32 %v255, 16
    %v260 = vshll.u32 %v256, 16
    %v261 = vshrl.u32 %v256, 16
    %vm262 = vc.u32 %v254, %v258
    %v263 = vsel %vm262, 1, 0
    %v264 = vadd.s32 %v254, %v258
    %v265 = vadd.s32 %v257, %v263
    %vm266 = vc.u32 %v264, %v260
    %v267 = vsel %vm266, 1, 0
    %v268 = vadd.s32 %v264, %v260
    %v269 = vadd.s32 %v265, %v267
    %v270 = vadd.s32 %v269, %v259
    %v271 = vadd.s32 %v270, %v261
    %v272 = vmul.u32 %v227, %v218
    %v273 = vadd.s32 %v249, %v268
    %vm274 = vc.u32 %v249, %v268
    %v275 = vadd.s32 %v271, 1
    %v276 = vsel %vm274, %v275, %v271
    %v277 = vadd.s32 %v272, %v276
    %v278 = vadd.s32 %v277, 536870912
    %v279 = vshrl.u32 %v278, 30
    %v280 = vshll.u32 %v279, 30
    %v281 = vsub.s32 %v277, %v280
    %vm282 = vcmp.lt.s32.totalorder %v281, 0
    %v283 = vsub.s32 0, %v281
    %v284 = vsel %vm282, %v283, %v281
    %v285 = vclz %v284
    %v286 = vsub.s32 %v285, 2
    %vm287 = vcmp.gt.s32.totalorder 0, %v286
    %v288 = vsel %vm287, 0, %v286
    %v289 = vsub.s32 32, %v288
    %v290 = vshll.u32 %v281, %v288
    %v291 = vshrl.u32 %v273, %v289
    %v292 = vor.u32 %v290, %v291
    %v293 = vsub.s32 4294967266, %v288
    %v294 = vadd.s32 %v293, 127
    %v295 = vshll.u32 %v294, 23
    %v296 = vor.u32 4788187, %v295
    %v297 = vand.u32 2147483647, %v296
    %v299 = vcvt.s32.f32 %v292
    %v300 = vmul.f32 %v299, %v297
    %v301 = vxor.u32 %v300, 2147483648
    %v302 = vsel %vm181, %v301, %v300
    %v303 = vsub.s32 4, %v279
    %v304 = vsel %vm181, %v303, %v279
    %v305 = vsel %vm180, %v23, %v302
    %v306 = vsel %vm180, 0, %v304
    %v307 = vmul.f32 %v305, %v305
    %v308 = vmul.f32 %v307, -0.001358992
    %v309 = vadd.f32 %v308, 0.041655596
    %v310 = vmul.f32 %v307, %v309
    %v311 = vadd.f32 %v310, -0.4999988
    %v312 = vmul.f32 %v307, %v311
    %v313 = vadd.f32 1.0, %v312
    %v314 = vmul.f32 %v305, %v305
    %v315 = vmul.f32 %v314, -0.00019511016
    %v316 = vadd.f32 %v315, 0.008332121
    %v317 = vmul.f32 %v314, %v316
    %v318 = vadd.f32 %v317, -0.16666654
    %v319 = vmul.f32 %v314, %v318
    %v320 = vadd.f32 %v319, 1.0
    %v321 = vmul.f32 %v320, %v305
    %vm322 = vweird.f32 %v23
    %v323 = vand.u32 %v306, 3
    %vm324 = vcmp.lt.s32.totalorder %v323, 2
    %vm325 = vcmp.eq.s32.totalorder %v323, 0
    %v326 = vxor.u32 %v321, 2147483648
    %v327 = vsel %vm325, %v313, %v326
    %vm328 = vcmp.eq.s32.totalorder %v323, 2
    %v329 = vxor.u32 %v313, 2147483648
    %v330 = vsel %vm328, %v329, %v321
    %v331 = vsel %vm324, %v327, %v330
    %v332 = vsel %vm322, nan, %v331
    %333 = vst [vmem:[#allocation2] sm:$0x3] %v178
    %334 = vst [vmem:[#allocation2 + $0x14] sm:$0x3] %v332
    %v335 = vmul.f32 %v178, %v332
    %v336 = vadd.f32 %v335, %v335
    %v337 = vmul.f32 %v332, %v332
    %v338 = vmul.f32 %v178, %v178
    %v339 = vsub.f32 %v337, %v338
    %340 = vst [vmem:[#allocation2 + $0x2] sm:$0x3] %v336
    %341 = vst [vmem:[#allocation2 + $0x16] sm:$0x3] %v339
    %v342 = vmul.f32 %v336, %v332
    %v343 = vmul.f32 %v339, %v178
    %v344 = vadd.f32 %v342, %v343
    %v345 = vmul.f32 %v339, %v332
    %v346 = vmul.f32 %v336, %v178
    %v347 = vsub.f32 %v345, %v346
    %348 = vst [vmem:[#allocation2 + $0x4] sm:$0x3] %v344
    %349 = vst [vmem:[#allocation2 + $0x18] sm:$0x3] %v347
    %v350 = vmul.f32 %v344, %v332
    %v351 = vmul.f32 %v347, %v178
    %v352 = vadd.f32 %v350, %v351
    %v353 = vmul.f32 %v347, %v332
    %v354 = vmul.f32 %v344, %v178
    %v355 = vsub.f32 %v353, %v354
    %356 = vst [vmem:[#allocation2 + $0x6] sm:$0x3] %v352
    %357 = vst [vmem:[#allocation2 + $0x1a] sm:$0x3] %v355
    %v358 = vmul.f32 %v352, %v332
    %v359 = vmul.f32 %v355, %v178
    %v360 = vadd.f32 %v358, %v359
    %v361 = vmul.f32 %v355, %v332
    %v362 = vmul.f32 %v352, %v178
    %v363 = vsub.f32 %v361, %v362
    %364 = vst [vmem:[#allocation2 + $0x8] sm:$0x3] %v360
    %365 = vst [vmem:[#allocation2 + $0x1c] sm:$0x3] %v363
    %v366 = vmul.f32 %v360, %v332
    %v367 = vmul.f32 %v363, %v178
    %v368 = vadd.f32 %v366, %v367
    %v369 = vmul.f32 %v363, %v332
    %v370 = vmul.f32 %v360, %v178
    %v371 = vsub.f32 %v369, %v370
    %372 = vst [vmem:[#allocation2 + $0xa] sm:$0x3] %v368
    %373 = vst [vmem:[#allocation2 + $0x1e] sm:$0x3] %v371
    %v374 = vmul.f32 %v368, %v332
    %v375 = vmul.f32 %v371, %v178
    %v376 = vadd.f32 %v374, %v375
    %v377 = vmul.f32 %v371, %v332
    %v378 = vmul.f32 %v368, %v178
    %v379 = vsub.f32 %v377, %v378
    %380 = vst [vmem:[#allocation2 + $0xc] sm:$0x3] %v376
    %381 = vst [vmem:[#allocation2 + $0x20] sm:$0x3] %v379
    %v382 = vmul.f32 %v376, %v332
    %v383 = vmul.f32 %v379, %v178
    %v384 = vadd.f32 %v382, %v383
    %v385 = vmul.f32 %v379, %v332
    %v386 = vmul.f32 %v376, %v178
    %v387 = vsub.f32 %v385, %v386
    %388 = vst [vmem:[#allocation2 + $0xe] sm:$0x3] %v384
    %389 = vst [vmem:[#allocation2 + $0x22] sm:$0x3] %v387
    %v390 = vmul.f32 %v384, %v332
    %v391 = vmul.f32 %v387, %v178
    %v392 = vadd.f32 %v390, %v391
    %v393 = vmul.f32 %v387, %v332
    %v394 = vmul.f32 %v384, %v178
    %v395 = vsub.f32 %v393, %v394
    %396 = vst [vmem:[#allocation2 + $0x10] sm:$0x3] %v392
    %397 = vst [vmem:[#allocation2 + $0x24] sm:$0x3] %v395
    %v398 = vmul.f32 %v392, %v332
    %v399 = vmul.f32 %v395, %v178
    %v400 = vadd.f32 %v398, %v399
    %v401 = vmul.f32 %v395, %v332
    %v402 = vmul.f32 %v392, %v178
    %v403 = vsub.f32 %v401, %v402
    %404 = vst [vmem:[#allocation2 + $0x12] sm:$0x3] %v400
    %405 = vst [vmem:[#allocation2 + $0x26] sm:$0x3] %v403
    %v406 = vld [vmem:[#allocation2] sm:$0xff]
    %v407 = vld [vmem:[#allocation2 + $0x8] sm:$0xff]
    %v408 = vld [vmem:[#allocation2 + $0x10] sm:$0xff]
    %v409 = vld [vmem:[#allocation2 + $0x18] sm:$0xff]
    %v410 = vld [vmem:[#allocation2 + $0x20] sm:$0xff]
    %411 = vxpose.xlu0.b32.start [1/16] %v406, 128
    %412 = vxpose.xlu0.b32.cont [2/16] %v407, 128
    %413 = vxpose.xlu0.b32.cont [3/16] %v408, 128
    %414 = vxpose.xlu0.b32.cont [4/16] %v409, 128
    %415 = vxpose.xlu0.b32.cont [5/16] %v410, 128
    %416 = vxpose.xlu0.b32.cont [6/16] 0.0, 128
    %417 = vxpose.xlu0.b32.cont [7/16] 0.0, 128
    %418 = vxpose.xlu0.b32.cont [8/16] 0.0, 128
    %419 = vxpose.xlu0.b32.cont [9/16] 0.0, 128
    %420 = vxpose.xlu0.b32.cont [10/16] 0.0, 128
    %421 = vxpose.xlu0.b32.cont [11/16] 0.0, 128
    %422 = vxpose.xlu0.b32.cont [12/16] 0.0, 128
    %423 = vxpose.xlu0.b32.cont [13/16] 0.0, 128
    %424 = vxpose.xlu0.b32.cont [14/16] 0.0, 128
    %425 = vxpose.xlu0.b32.cont [15/16] 0.0, 128
    %426 = vxpose.xlu0.b32.end [16/16] 0.0, 128
    %v427 = vpop.trf.xlu0
    %v428 = vpop.trf.xlu0
    %v429 = vpop.trf.xlu0
    %v430 = vpop.trf.xlu0
    %v431 = vpop.trf.xlu0
    %v432 = vpop.trf.xlu0
    %v433 = vpop.trf.xlu0
    %v434 = vpop.trf.xlu0
    %v435 = vpop.trf.xlu0
    %v436 = vpop.trf.xlu0
    %v437 = vpop.trf.xlu0
    %v438 = vpop.trf.xlu0
    %v439 = vpop.trf.xlu0
    %v440 = vpop.trf.xlu0
    %v441 = vpop.trf.xlu0
    %v442 = vpop.trf.xlu0
    %vm443 = vcmask 326656
    %444 = vst.msk [vmem:[%s1] sm:$0xff] %vm443, %v427
    %445 = vst.msk [vmem:[%s1 + $0x8] sm:$0xff] %vm443, %v428
    %446 = vst.msk [vmem:[%s1 + $0x10] sm:$0xff] %vm443, %v429
    %447 = vst.msk [vmem:[%s1 + $0x18] sm:$0xff] %vm443, %v430
    %448 = vst.msk [vmem:[%s1 + $0x20] sm:$0xff] %vm443, %v431
    %449 = vst.msk [vmem:[%s1 + $0x28] sm:$0xff] %vm443, %v432
    %450 = vst.msk [vmem:[%s1 + $0x30] sm:$0xff] %vm443, %v433
    %451 = vst.msk [vmem:[%s1 + $0x38] sm:$0xff] %vm443, %v434
    %452 = vst.msk [vmem:[%s1 + $0x40] sm:$0xff] %vm443, %v435
    %453 = vst.msk [vmem:[%s1 + $0x48] sm:$0xff] %vm443, %v436
    %454 = vst.msk [vmem:[%s1 + $0x50] sm:$0xff] %vm443, %v437
    %455 = vst.msk [vmem:[%s1 + $0x58] sm:$0xff] %vm443, %v438
    %456 = vst.msk [vmem:[%s1 + $0x60] sm:$0xff] %vm443, %v439
    %457 = vst.msk [vmem:[%s1 + $0x68] sm:$0xff] %vm443, %v440
    %458 = vst.msk [vmem:[%s1 + $0x70] sm:$0xff] %vm443, %v441
    %459 = vst.msk [vmem:[%s1 + $0x78] sm:$0xff] %vm443, %v442
    // Predicated region
    $region10: #{tpu_custom_call.1} parent=1 // pred_check
      _
    $region11: #{tpu_custom_call.1} parent=1 // pred_check_branch
      %461 = sbr.rel (0) target = $region13
    $region12: #{tpu_custom_call.1} parent=1 // pred_region
      _
    $region13: #{tpu_custom_call.1} parent=1 // pred_fallthru
      _
    // Predicated region
    $region14: #{tpu_custom_call.1} parent=1 // pred_check
      _
    $region15: #{tpu_custom_call.1} parent=1 // pred_check_branch
      %463 = sbr.rel (0) target = $region17
    $region16: #{tpu_custom_call.1} parent=1 // pred_region
      _
    $region17: #{tpu_custom_call.1} parent=1 // pred_fallthru
      _
    %464 = vsyncpa [#allocation4], 1

// kernel: tpu_custom_call.1
$region0: #{tpu_custom_call.1}
  #allocation0 [shape = 'u32[]', space=smem, size = 0x4, offset = 0x4, fixed_abs, tag = 'smem constant byte address 0x4 - core index']
  #allocation1 [shape = 'u32[72,128]{1,0:T(1,128)}', space=vmem, size = 0x9000, scoped, tag = 'internal scratch']
  %s0 = inlined_call_operand.hbm [shape: f32[2,128], index: 0, kind: input, shape index: {}]
  %s1 = inlined_call_operand.hbm [shape: f32[40,128], index: 1, kind: output, shape index: {}]
  %s2 = sld [smem:[#allocation0]]
  $region18: #{tpu_custom_call.1} parent=0
    _
  %s4 = ssub.s32 1, %s2
  %s5 = scalar_select 0, %s4, %s2
  $region1: #{tpu_custom_call.1} parent=0
    #allocation2 [shape = 'u8[1024]{0}', space=vmem, size = 0x400, scoped, tag = 'input window, operand 0, single buffered']
    #allocation3 [shape = 's32[1]{0}', space=sflag, size = 0x4, scoped, tag = 'scoped memory for tpu_custom_call.1']
    #allocation4 [shape = 's32[1]{0}', space=sflag, size = 0x4, scoped, tag = 'scoped memory for tpu_custom_call.1']
    #allocation5 [shape = 'u8[20480]{0}', space=vmem, size = 0x5000, scoped, tag = 'output window, operand 0, single buffered']
    %6 = vsyncpa [#allocation3], 0
    %7 = vsyncpa [#allocation4], 0
    // Predicated region
    $region2: #{tpu_custom_call.1} parent=1 // pred_check
      _
    $region3: #{tpu_custom_call.1} parent=1 // pred_check_branch
      %9 = sbr.rel (0) target = $region5
    $region4: #{tpu_custom_call.1} parent=1 // pred_region
      %11 = vsyncadd [#allocation3], 0
      %s13 = sshll.u32 %s0, 4
      %s14 = int_to_ptr.hbm [resolvable:$true] %s13
      %s15 = sshll.u32 [#allocation2], 4
      %s16 = int_to_ptr.vmem [resolvable:$true] %s15
      %18 = dma.hbm_to_vmem [thread:$0]  %s14, 32, %s16, [#allocation3]
    $region5: #{tpu_custom_call.1} parent=1 // pred_fallthru
      _
    // Predicated region
    $region6: #{tpu_custom_call.1} parent=1 // pred_check
      _
    $region7: #{tpu_custom_call.1} parent=1 // pred_check_branch
      %20 = sbr.rel (0) target = $region9
    $region8: #{tpu_custom_call.1} parent=1 // pred_region
      %22 = dma.done [#allocation3], 32
    $region9: #{tpu_custom_call.1} parent=1 // pred_fallthru
      _
    %v23 = vld [vmem:[#allocation2] sm:$0x3]
    %v24 = vmul.f32 %v23, 3.1415927
    %v25 = vand.u32 2147483647, %v24
    %vm26 = vcmp.le.f32.partialorder %v25, 0.7853982
    %vm27 = vcmp.lt.s32.totalorder %v24, 0
    %v28 = vand.u32 %v24, 2139095040
    %v29 = vshrl.u32 %v28, 23
    %v30 = vsub.s32 %v29, 127
    %v31 = vand.u32 2147483647, %v24
    %v32 = vand.u32 %v31, 8388607
    %v33 = vor.u32 %v32, 8388608
    %v34 = vsub.s32 0, %v33
    %v35 = vadd.s32 %v30, 1
    %vm36 = vcmp.gt.s32.totalorder %v35, 0
    %v37 = vsel %vm36, %v35, 0
    %v38 = vshrl.u32 %v37, 5
    %v39 = vand.u32 %v37, 31
    %v40 = vsub.s32 32, %v39
    %v41 = vshrl.u32 683565275, %v40
    %v42 = vshll.u32 683565275, %v39
    %v43 = vshrl.u32 2475754826, %v40
    %v44 = vor.u32 %v42, %v43
    %v45 = vshll.u32 2475754826, %v39
    %v46 = vshrl.u32 2131351028, %v40
    %v47 = vor.u32 %v45, %v46
    %v48 = vshll.u32 2131351028, %v39
    %v49 = vshrl.u32 2102212464, %v40
    %v50 = vor.u32 %v48, %v49
    %v51 = vshll.u32 2102212464, %v39
    %v52 = vshrl.u32 920167782, %v40
    %v53 = vor.u32 %v51, %v52
    %v54 = vshll.u32 920167782, %v39
    %v55 = vshrl.u32 1326507024, %v40
    %v56 = vor.u32 %v54, %v55
    %vm57 = vcmp.lt.s32.totalorder %v38, 1
    %vm58 = vcmp.lt.s32.totalorder %v38, 2
    %vm59 = vcmp.lt.s32.totalorder %v38, 3
    %vm60 = vcmp.lt.s32.totalorder %v38, 4
    %v61 = vsel %vm57, %v41, %v44
    %v62 = vsel %vm60, %v50, 2102212464
    %v63 = vsel %vm59, %v47, %v62
    %v64 = vsel %vm58, %v61, %v63
    %v65 = vsel %vm57, %v44, %v47
    %v66 = vsel %vm60, %v53, 920167782
    %v67 = vsel %vm59, %v50, %v66
    %v68 = vsel %vm58, %v65, %v67
    %v69 = vsel %vm57, %v47, %v50
    %v70 = vsel %vm60, %v56, 1326507024
    %v71 = vsel %vm59, %v53, %v70
    %v72 = vsel %vm58, %v69, %v71
    %v73 = vshll.u32 %v33, 8
    %v74 = vand.u32 %v73, 65535
    %v75 = vshrl.u32 %v73, 16
    %v76 = vand.u32 %v72, 65535
    %v77 = vshrl.u32 %v72, 16
    %v78 = vmul.u32 %v74, %v76
    %v79 = vmul.u32 %v74, %v77
    %v80 = vmul.u32 %v75, %v76
    %v81 = vmul.u32 %v75, %v77
    %v82 = vshll.u32 %v79, 16
    %v83 = vshrl.u32 %v79, 16
    %v84 = vshll.u32 %v80, 16
    %v85 = vshrl.u32 %v80, 16
    %vm86 = vc.u32 %v78, %v82
    %v87 = vsel %vm86, 1, 0
    %v88 = vadd.s32 %v78, %v82
    %v89 = vadd.s32 %v81, %v87
    %vm90 = vc.u32 %v88, %v84
    %v91 = vsel %vm90, 1, 0
    %v92 = vadd.s32 %v88, %v84
    %v93 = vadd.s32 %v89, %v91
    %v94 = vadd.s32 %v93, %v83
    %v95 = vadd.s32 %v94, %v85
    %v96 = vand.u32 %v73, 65535
    %v97 = vshrl.u32 %v73, 16
    %v98 = vand.u32 %v68, 65535
    %v99 = vshrl.u32 %v68, 16
    %v100 = vmul.u32 %v96, %v98
    %v101 = vmul.u32 %v96, %v99
    %v102 = vmul.u32 %v97, %v98
    %v103 = vmul.u32 %v97, %v99
    %v104 = vshll.u32 %v101, 16
    %v105 = vshrl.u32 %v101, 16
    %v106 = vshll.u32 %v102, 16
    %v107 = vshrl.u32 %v102, 16
    %vm108 = vc.u32 %v100, %v104
    %v109 = vsel %vm108, 1, 0
    %v110 = vadd.s32 %v100, %v104
    %v111 = vadd.s32 %v103, %v109
    %vm112 = vc.u32 %v110, %v106
    %v113 = vsel %vm112, 1, 0
    %v114 = vadd.s32 %v110, %v106
    %v115 = vadd.s32 %v111, %v113
    %v116 = vadd.s32 %v115, %v105
    %v117 = vadd.s32 %v116, %v107
    %v118 = vmul.u32 %v73, %v64
    %v119 = vadd.s32 %v95, %v114
    %vm120 = vc.u32 %v95, %v114
    %v121 = vadd.s32 %v117, 1
    %v122 = vsel %vm120, %v121, %v117
    %v123 = vadd.s32 %v118, %v122
    %v124 = vadd.s32 %v123, 536870912
    %v125 = vshrl.u32 %v124, 30
    %v126 = vshll.u32 %v125, 30
    %v127 = vsub.s32 %v123, %v126
    %vm128 = vcmp.lt.s32.totalorder %v127, 0
    %v129 = vsub.s32 0, %v127
    %v130 = vsel %vm128, %v129, %v127
    %v131 = vclz %v130
    %v132 = vsub.s32 %v131, 2
    %vm133 = vcmp.gt.s32.totalorder 0, %v132
    %v134 = vsel %vm133, 0, %v132
    %v135 = vsub.s32 32, %v134
    %v136 = vshll.u32 %v127, %v134
    %v137 = vshrl.u32 %v119, %v135
    %v138 = vor.u32 %v136, %v137
    %v139 = vsub.s32 4294967266, %v134
    %v140 = vadd.s32 %v139, 127
    %v141 = vshll.u32 %v140, 23
    %v142 = vor.u32 4788187, %v141
    %v143 = vand.u32 2147483647, %v142
    %v145 = vcvt.s32.f32 %v138
    %v146 = vmul.f32 %v145, %v143
    %v147 = vxor.u32 %v146, 2147483648
    %v148 = vsel %vm27, %v147, %v146
    %v149 = vsub.s32 4, %v125
    %v150 = vsel %vm27, %v149, %v125
    %v151 = vsel %vm26, %v24, %v148
    %v152 = vsel %vm26, 0, %v150
    %v153 = vmul.f32 %v151, %v151
    %v154 = vmul.f32 %v153, -0.001358992
    %v155 = vadd.f32 %v154, 0.041655596
    %v156 = vmul.f32 %v153, %v155
    %v157 = vadd.f32 %v156, -0.4999988
    %v158 = vmul.f32 %v153, %v157
    %v159 = vadd.f32 1.0, %v158
    %v160 = vmul.f32 %v151, %v151
    %v161 = vmul.f32 %v160, -0.00019511016
    %v162 = vadd.f32 %v161, 0.008332121
    %v163 = vmul.f32 %v160, %v162
    %v164 = vadd.f32 %v163, -0.16666654
    %v165 = vmul.f32 %v160, %v164
    %v166 = vadd.f32 %v165, 1.0
    %v167 = vmul.f32 %v166, %v151
    %vm168 = vweird.f32 %v24
    %v169 = vadd.s32 %v152, 3
    %v170 = vand.u32 %v169, 3
    %vm171 = vcmp.lt.s32.totalorder %v170, 2
    %vm172 = vcmp.eq.s32.totalorder %v170, 0
    %v173 = vxor.u32 %v167, 2147483648
    %v174 = vsel %vm172, %v159, %v173
    %vm175 = vcmp.eq.s32.totalorder %v170, 2
    %v176 = vxor.u32 %v159, 2147483648
    %v177 = vsel %vm175, %v176, %v167
    %v178 = vsel %vm171, %v174, %v177
    %v179 = vsel %vm168, nan, %v178
    %v180 = vand.u32 2147483647, %v24
    %vm181 = vcmp.le.f32.partialorder %v180, 0.7853982
    %vm182 = vcmp.lt.s32.totalorder %v24, 0
    %v183 = vand.u32 %v24, 2139095040
    %v184 = vshrl.u32 %v183, 23
    %v185 = vsub.s32 %v184, 127
    %v186 = vand.u32 2147483647, %v24
    %v187 = vand.u32 %v186, 8388607
    %v188 = vor.u32 %v187, 8388608
    %v189 = vsub.s32 0, %v188
    %v190 = vadd.s32 %v185, 1
    %vm191 = vcmp.gt.s32.totalorder %v190, 0
    %v192 = vsel %vm191, %v190, 0
    %v193 = vshrl.u32 %v192, 5
    %v194 = vand.u32 %v192, 31
    %v195 = vsub.s32 32, %v194
    %v196 = vshrl.u32 683565275, %v195
    %v197 = vshll.u32 683565275, %v194
    %v198 = vshrl.u32 2475754826, %v195
    %v199 = vor.u32 %v197, %v198
    %v200 = vshll.u32 2475754826, %v194
    %v201 = vshrl.u32 2131351028, %v195
    %v202 = vor.u32 %v200, %v201
    %v203 = vshll.u32 2131351028, %v194
    %v204 = vshrl.u32 2102212464, %v195
    %v205 = vor.u32 %v203, %v204
    %v206 = vshll.u32 2102212464, %v194
    %v207 = vshrl.u32 920167782, %v195
    %v208 = vor.u32 %v206, %v207
    %v209 = vshll.u32 920167782, %v194
    %v210 = vshrl.u32 1326507024, %v195
    %v211 = vor.u32 %v209, %v210
    %vm212 = vcmp.lt.s32.totalorder %v193, 1
    %vm213 = vcmp.lt.s32.totalorder %v193, 2
    %vm214 = vcmp.lt.s32.totalorder %v193, 3
    %vm215 = vcmp.lt.s32.totalorder %v193, 4
    %v216 = vsel %vm212, %v196, %v199
    %v217 = vsel %vm215, %v205, 2102212464
    %v218 = vsel %vm214, %v202, %v217
    %v219 = vsel %vm213, %v216, %v218
    %v220 = vsel %vm212, %v199, %v202
    %v221 = vsel %vm215, %v208, 920167782
    %v222 = vsel %vm214, %v205, %v221
    %v223 = vsel %vm213, %v220, %v222
    %v224 = vsel %vm212, %v202, %v205
    %v225 = vsel %vm215, %v211, 1326507024
    %v226 = vsel %vm214, %v208, %v225
    %v227 = vsel %vm213, %v224, %v226
    %v228 = vshll.u32 %v188, 8
    %v229 = vand.u32 %v228, 65535
    %v230 = vshrl.u32 %v228, 16
    %v231 = vand.u32 %v227, 65535
    %v232 = vshrl.u32 %v227, 16
    %v233 = vmul.u32 %v229, %v231
    %v234 = vmul.u32 %v229, %v232
    %v235 = vmul.u32 %v230, %v231
    %v236 = vmul.u32 %v230, %v232
    %v237 = vshll.u32 %v234, 16
    %v238 = vshrl.u32 %v234, 16
    %v239 = vshll.u32 %v235, 16
    %v240 = vshrl.u32 %v235, 16
    %vm241 = vc.u32 %v233, %v237
    %v242 = vsel %vm241, 1, 0
    %v243 = vadd.s32 %v233, %v237
    %v244 = vadd.s32 %v236, %v242
    %vm245 = vc.u32 %v243, %v239
    %v246 = vsel %vm245, 1, 0
    %v247 = vadd.s32 %v243, %v239
    %v248 = vadd.s32 %v244, %v246
    %v249 = vadd.s32 %v248, %v238
    %v250 = vadd.s32 %v249, %v240
    %v251 = vand.u32 %v228, 65535
    %v252 = vshrl.u32 %v228, 16
    %v253 = vand.u32 %v223, 65535
    %v254 = vshrl.u32 %v223, 16
    %v255 = vmul.u32 %v251, %v253
    %v256 = vmul.u32 %v251, %v254
    %v257 = vmul.u32 %v252, %v253
    %v258 = vmul.u32 %v252, %v254
    %v259 = vshll.u32 %v256, 16
    %v260 = vshrl.u32 %v256, 16
    %v261 = vshll.u32 %v257, 16
    %v262 = vshrl.u32 %v257, 16
    %vm263 = vc.u32 %v255, %v259
    %v264 = vsel %vm263, 1, 0
    %v265 = vadd.s32 %v255, %v259
    %v266 = vadd.s32 %v258, %v264
    %vm267 = vc.u32 %v265, %v261
    %v268 = vsel %vm267, 1, 0
    %v269 = vadd.s32 %v265, %v261
    %v270 = vadd.s32 %v266, %v268
    %v271 = vadd.s32 %v270, %v260
    %v272 = vadd.s32 %v271, %v262
    %v273 = vmul.u32 %v228, %v219
    %v274 = vadd.s32 %v250, %v269
    %vm275 = vc.u32 %v250, %v269
    %v276 = vadd.s32 %v272, 1
    %v277 = vsel %vm275, %v276, %v272
    %v278 = vadd.s32 %v273, %v277
    %v279 = vadd.s32 %v278, 536870912
    %v280 = vshrl.u32 %v279, 30
    %v281 = vshll.u32 %v280, 30
    %v282 = vsub.s32 %v278, %v281
    %vm283 = vcmp.lt.s32.totalorder %v282, 0
    %v284 = vsub.s32 0, %v282
    %v285 = vsel %vm283, %v284, %v282
    %v286 = vclz %v285
    %v287 = vsub.s32 %v286, 2
    %vm288 = vcmp.gt.s32.totalorder 0, %v287
    %v289 = vsel %vm288, 0, %v287
    %v290 = vsub.s32 32, %v289
    %v291 = vshll.u32 %v282, %v289
    %v292 = vshrl.u32 %v274, %v290
    %v293 = vor.u32 %v291, %v292
    %v294 = vsub.s32 4294967266, %v289
    %v295 = vadd.s32 %v294, 127
    %v296 = vshll.u32 %v295, 23
    %v297 = vor.u32 4788187, %v296
    %v298 = vand.u32 2147483647, %v297
    %v300 = vcvt.s32.f32 %v293
    %v301 = vmul.f32 %v300, %v298
    %v302 = vxor.u32 %v301, 2147483648
    %v303 = vsel %vm182, %v302, %v301
    %v304 = vsub.s32 4, %v280
    %v305 = vsel %vm182, %v304, %v280
    %v306 = vsel %vm181, %v24, %v303
    %v307 = vsel %vm181, 0, %v305
    %v308 = vmul.f32 %v306, %v306
    %v309 = vmul.f32 %v308, -0.001358992
    %v310 = vadd.f32 %v309, 0.041655596
    %v311 = vmul.f32 %v308, %v310
    %v312 = vadd.f32 %v311, -0.4999988
    %v313 = vmul.f32 %v308, %v312
    %v314 = vadd.f32 1.0, %v313
    %v315 = vmul.f32 %v306, %v306
    %v316 = vmul.f32 %v315, -0.00019511016
    %v317 = vadd.f32 %v316, 0.008332121
    %v318 = vmul.f32 %v315, %v317
    %v319 = vadd.f32 %v318, -0.16666654
    %v320 = vmul.f32 %v315, %v319
    %v321 = vadd.f32 %v320, 1.0
    %v322 = vmul.f32 %v321, %v306
    %vm323 = vweird.f32 %v24
    %v324 = vand.u32 %v307, 3
    %vm325 = vcmp.lt.s32.totalorder %v324, 2
    %vm326 = vcmp.eq.s32.totalorder %v324, 0
    %v327 = vxor.u32 %v322, 2147483648
    %v328 = vsel %vm326, %v314, %v327
    %vm329 = vcmp.eq.s32.totalorder %v324, 2
    %v330 = vxor.u32 %v314, 2147483648
    %v331 = vsel %vm329, %v330, %v322
    %v332 = vsel %vm325, %v328, %v331
    %v333 = vsel %vm323, nan, %v332
    %334 = vst [vmem:[#allocation5] sm:$0x3] %v179
    %335 = vst [vmem:[#allocation5 + $0x14] sm:$0x3] %v333
    %v336 = vmul.f32 %v179, %v333
    %v337 = vadd.f32 %v336, %v336
    %v338 = vmul.f32 %v333, %v333
    %v339 = vmul.f32 %v179, %v179
    %v340 = vsub.f32 %v338, %v339
    %341 = vst [vmem:[#allocation5 + $0x2] sm:$0x3] %v337
    %342 = vst [vmem:[#allocation5 + $0x16] sm:$0x3] %v340
    %v343 = vmul.f32 %v337, %v333
    %v344 = vmul.f32 %v340, %v179
    %v345 = vadd.f32 %v343, %v344
    %v346 = vmul.f32 %v340, %v333
    %v347 = vmul.f32 %v337, %v179
    %v348 = vsub.f32 %v346, %v347
    %349 = vst [vmem:[#allocation5 + $0x4] sm:$0x3] %v345
    %350 = vst [vmem:[#allocation5 + $0x18] sm:$0x3] %v348
    %v351 = vmul.f32 %v345, %v333
    %v352 = vmul.f32 %v348, %v179
    %v353 = vadd.f32 %v351, %v352
    %v354 = vmul.f32 %v348, %v333
    %v355 = vmul.f32 %v345, %v179
    %v356 = vsub.f32 %v354, %v355
    %357 = vst [vmem:[#allocation5 + $0x6] sm:$0x3] %v353
    %358 = vst [vmem:[#allocation5 + $0x1a] sm:$0x3] %v356
    %v359 = vmul.f32 %v353, %v333
    %v360 = vmul.f32 %v356, %v179
    %v361 = vadd.f32 %v359, %v360
    %v362 = vmul.f32 %v356, %v333
    %v363 = vmul.f32 %v353, %v179
    %v364 = vsub.f32 %v362, %v363
    %365 = vst [vmem:[#allocation5 + $0x8] sm:$0x3] %v361
    %366 = vst [vmem:[#allocation5 + $0x1c] sm:$0x3] %v364
    %v367 = vmul.f32 %v361, %v333
    %v368 = vmul.f32 %v364, %v179
    %v369 = vadd.f32 %v367, %v368
    %v370 = vmul.f32 %v364, %v333
    %v371 = vmul.f32 %v361, %v179
    %v372 = vsub.f32 %v370, %v371
    %373 = vst [vmem:[#allocation5 + $0xa] sm:$0x3] %v369
    %374 = vst [vmem:[#allocation5 + $0x1e] sm:$0x3] %v372
    %v375 = vmul.f32 %v369, %v333
    %v376 = vmul.f32 %v372, %v179
    %v377 = vadd.f32 %v375, %v376
    %v378 = vmul.f32 %v372, %v333
    %v379 = vmul.f32 %v369, %v179
    %v380 = vsub.f32 %v378, %v379
    %381 = vst [vmem:[#allocation5 + $0xc] sm:$0x3] %v377
    %382 = vst [vmem:[#allocation5 + $0x20] sm:$0x3] %v380
    %v383 = vmul.f32 %v377, %v333
    %v384 = vmul.f32 %v380, %v179
    %v385 = vadd.f32 %v383, %v384
    %v386 = vmul.f32 %v380, %v333
    %v387 = vmul.f32 %v377, %v179
    %v388 = vsub.f32 %v386, %v387
    %389 = vst [vmem:[#allocation5 + $0xe] sm:$0x3] %v385
    %390 = vst [vmem:[#allocation5 + $0x22] sm:$0x3] %v388
    %v391 = vmul.f32 %v385, %v333
    %v392 = vmul.f32 %v388, %v179
    %v393 = vadd.f32 %v391, %v392
    %v394 = vmul.f32 %v388, %v333
    %v395 = vmul.f32 %v385, %v179
    %v396 = vsub.f32 %v394, %v395
    %397 = vst [vmem:[#allocation5 + $0x10] sm:$0x3] %v393
    %398 = vst [vmem:[#allocation5 + $0x24] sm:$0x3] %v396
    %v399 = vmul.f32 %v393, %v333
    %v400 = vmul.f32 %v396, %v179
    %v401 = vadd.f32 %v399, %v400
    %v402 = vmul.f32 %v396, %v333
    %v403 = vmul.f32 %v393, %v179
    %v404 = vsub.f32 %v402, %v403
    %405 = vst [vmem:[#allocation5 + $0x12] sm:$0x3] %v401
    %406 = vst [vmem:[#allocation5 + $0x26] sm:$0x3] %v404
    // Predicated region
    $region10: #{tpu_custom_call.1} parent=1 // pred_check
      _
    $region11: #{tpu_custom_call.1} parent=1 // pred_check_branch
      %408 = sbr.rel (0) target = $region13
    $region12: #{tpu_custom_call.1} parent=1 // pred_region
      %410 = vsyncadd [#allocation4], 0
      %s411 = sshll.u32 [#allocation5], 4
      %s412 = int_to_ptr.vmem [resolvable:$true] %s411
      %s413 = sshll.u32 %s1, 4
      %s414 = int_to_ptr.hbm [resolvable:$true] %s413
      %419 = dma.vmem_to_hbm [thread:$0]  %s412, 640, %s414, [#allocation4], 128, 128, 8
    $region13: #{tpu_custom_call.1} parent=1 // pred_fallthru
      _
    // Predicated region
    $region14: #{tpu_custom_call.1} parent=1 // pred_check
      _
    $region15: #{tpu_custom_call.1} parent=1 // pred_check_branch
      %421 = sbr.rel (0) target = $region17
    $region16: #{tpu_custom_call.1} parent=1 // pred_region
      %423 = dma.done [#allocation4], 640
    $region17: #{tpu_custom_call.1} parent=1 // pred_fallthru
      _
    %424 = vsyncpa [#allocation3], 1
    %425 = vsyncpa [#allocation4], 1

</llo_original>
